<compile_context>
chip_gen: v7x
topology: tpu7x:2x2x1
jax: 0.10.0
libtpu: 0.0.40
codegen_flags: <defaults>
</compile_context>

<pallas_src>
import functools

import jax
import jax.numpy as jnp
from jax.experimental import pallas as pl
from jax.experimental.pallas import tpu as pltpu

_LANE = 128


def _cdiv(a, b):
    return -(-a // b)


def _prenorm_kernel(x_ref, g_ref, b_ref, o_ref, *, eps, inv_c, act, cast_params):
    # x_ref: (C, TS, 128) on the small-C path or (C, TL) on the general path.
    # The channel reduction is axis 0 in both layouts; lane columns are
    # independent, so ragged (out-of-bounds) columns in the final block never
    # affect real columns and are masked on store by Pallas.
    x = x_ref[...].astype(jnp.float32)

    # Two-pass mean/variance (biased, matches torch.var(unbiased=False)).
    # NOTE: reductions could be pushed to the MXU (dot with a ones vector) if
    # profiling shows the VPU slot binding on v7x; memory-bound today.
    mean = jnp.sum(x, axis=0, keepdims=True) * inv_c
    d = x - mean
    var = jnp.sum(d * d, axis=0, keepdims=True) * inv_c
    inv = jax.lax.rsqrt(var + eps)                       # EUP

    g = g_ref[...]
    b = b_ref[...]
    if cast_params:
        g = g.astype(jnp.float32)
        b = b.astype(jnp.float32)

    y = d * inv * g + b
    if act is not None:                                  # fused elementwise fn epilogue
        y = act(y)
    o_ref[...] = y.astype(o_ref.dtype)


def _choose_cols(C, n_cols, itemsize, B):
    """Block width in 128-lane columns.

    Budget covers the double-buffered in/out tiles PLUS ~3 f32 tile temporaries
    (x, d, y) so the kernel stays inside scoped VMEM on every generation
    (v7x: 64 MiB physical).  Capped at 16 columns (2048 lanes); the memory-bound
    roofline is flat past ~512-1024 lanes."""
    budget = 20 * 1024 * 1024
    per_col = C * _LANE * (4 * itemsize + 3 * 4)
    cols = max(1, min(16, n_cols, budget // per_col))
    # v7x has 2 TensorCores: keep at least 2 parallel grid points when possible.
    if B * _cdiv(n_cols, cols) < 2 and cols > 4:
        cols = max(4, _cdiv(n_cols, 2))
    return cols


def _vmem_limit_bytes():
    # Leave headroom under physical VMEM: ~48 MiB on v7x (64 MiB), 64 MiB on
    # v5e/v6e (128 MiB).
    cap = 64 * 1024 * 1024
    try:
        cap = int(getattr(pltpu.get_tpu_info(), "vmem_capacity_bytes", cap))
    except Exception:
        pass
    return int(min(64 * 1024 * 1024, max(32 * 1024 * 1024, cap - 16 * 1024 * 1024)))


def layer_norm_nchw(x, g, b, *, eps=1e-5, fused_elementwise=None):
    """Channel-wise LayerNorm matching the PyTorch module; x is NCHW.
    If `fused_elementwise` is given it is applied inside the kernel epilogue."""
    B, C, H, W = x.shape
    HW = H * W
    itemsize = jnp.dtype(x.dtype).itemsize
    sublane_pack = max(1, 32 // itemsize)                # 8 f32 / 16 bf16 / 32 int8
    cast_params = jnp.dtype(g.dtype) != jnp.float32

    kernel = functools.partial(
        _prenorm_kernel, eps=eps, inv_c=1.0 / C, act=fused_elementwise,
        cast_params=cast_params)

    cost = pl.CostEstimate(
        flops=10 * B * C * HW,
        transcendentals=B * HW * (1 + (C if fused_elementwise is not None else 0)),
        bytes_accessed=2 * B * C * HW * itemsize + 2 * C * jnp.dtype(g.dtype).itemsize,
    )
    cparams = pltpu.CompilerParams(
        dimension_semantics=("parallel", "parallel"),
        vmem_limit_bytes=_vmem_limit_bytes(),
    )

    use_small_c = (HW % _LANE == 0) and (C < sublane_pack or C % sublane_pack != 0)

    if use_small_c:
        # Layout (B, C, HW/128, 128): vregs fully occupied even for tiny C;
        # the channel reduce is plain vreg-wise VPU adds.
        nL = HW // _LANE
        cols = _choose_cols(C, nL, itemsize, B)
        # (8,128) rule on the last two block dims (TS, 128).
        ts = nL if (cols >= nL or nL <= 8) else max(8, (cols // 8) * 8)
        grid = (B, _cdiv(nL, ts))
        x_r = x.reshape(B, C, nL, _LANE)                 # free (contiguous) reshape
        g_r = jnp.reshape(g, (C, 1, 1))
        b_r = jnp.reshape(b, (C, 1, 1))
        in_specs = [
            pl.BlockSpec((None, C, ts, _LANE), lambda i, j: (i, 0, j, 0)),
            pl.BlockSpec((C, 1, 1), lambda i, j: (0, 0, 0)),
            pl.BlockSpec((C, 1, 1), lambda i, j: (0, 0, 0)),
        ]
        out_spec = pl.BlockSpec((None, C, ts, _LANE), lambda i, j: (i, 0, j, 0))
        out_shape = jax.ShapeDtypeStruct((B, C, nL, _LANE), x.dtype)
    else:
        # Layout (B, C, HW): channels on the sublane axis, spatial on lanes.
        cols = _choose_cols(C, _cdiv(HW, _LANE), itemsize, B)
        tl = cols * _LANE
        if tl >= HW:
            tl = HW                                      # block == full dim (always legal)
        grid = (B, _cdiv(HW, tl))
        x_r = x.reshape(B, C, HW)                        # free (contiguous) reshape
        g_r = jnp.reshape(g, (C, 1))
        b_r = jnp.reshape(b, (C, 1))
        in_specs = [
            pl.BlockSpec((None, C, tl), lambda i, j: (i, 0, j)),
            pl.BlockSpec((C, 1), lambda i, j: (0, 0)),
            pl.BlockSpec((C, 1), lambda i, j: (0, 0)),
        ]
        out_spec = pl.BlockSpec((None, C, tl), lambda i, j: (i, 0, j))
        out_shape = jax.ShapeDtypeStruct((B, C, HW), x.dtype)

    out = pl.pallas_call(
        kernel,
        out_shape=out_shape,
        grid_spec=pltpu.PrefetchScalarGridSpec(
            num_scalar_prefetch=0,
            grid=grid,
            in_specs=in_specs,
            out_specs=out_spec,
        ),
        compiler_params=cparams,
        cost_estimate=cost,
    )(x_r, g_r, b_r)

    return out.reshape(B, C, H, W)


def prenorm(x, g, b, fn=None, *, eps=1e-5, fused_elementwise=None):
    """PreNorm.forward: fn(LayerNorm(x)).

    If the wrapped fn is elementwise (GELU/SiLU/...), pass it as
    `fused_elementwise` so it runs inside the kernel (halves HBM traffic).
    """
    # TODO(synk): non-elementwise wrapped sub-modules (conv/attention) have no
    # in-kernel equivalent here and are applied as a plain JAX callable `fn`.
    y = layer_norm_nchw(x, g, b, eps=eps, fused_elementwise=fused_elementwise)
    if fn is not None:
        y = fn(y)
    return y


def _reference_layer_norm(x, g, b, eps=1e-5):
    xf = x.astype(jnp.float32)
    mean = jnp.mean(xf, axis=1, keepdims=True)
    var = jnp.mean((xf - mean) ** 2, axis=1, keepdims=True)
    C = x.shape[1]
    gf = g.reshape(1, C, 1, 1).astype(jnp.float32)
    bf = b.reshape(1, C, 1, 1).astype(jnp.float32)
    return ((xf - mean) / jnp.sqrt(var + eps) * gf + bf).astype(x.dtype)


if __name__ == "__main__":
    key = jax.random.PRNGKey(0)

    # Primary case: matches the module defaults (small-C vreg-dense path).
    B, C, H, W = 2, 4, 16, 16
    k1, k2 = jax.random.split(key)
    x = jax.random.normal(k1, (B, C, H, W), dtype=jnp.float32)
    g = jnp.ones((1, C, 1, 1), dtype=jnp.float32)     # nn.Parameter(torch.ones(1,dim,1,1))
    b = jnp.zeros((1, C, 1, 1), dtype=jnp.float32)    # nn.Parameter(torch.zeros(1,dim,1,1))
    act = functools.partial(jax.nn.gelu, approximate=True)   # wrapped fn, fused in-kernel

    out = prenorm(x, g, b, fused_elementwise=act)
    out = jax.block_until_ready(out)
    ref = act(_reference_layer_norm(x, g, b))
    assert out.shape == (B, C, H, W)
    assert jnp.allclose(out, ref, atol=3e-5, rtol=1e-5)

    # Secondary case: exercises the general (sublane-reduce) path with a
    # non-lane-aligned spatial size; no wrapper pad/slice is involved.
    B2, C2, H2, W2 = 2, 8, 9, 9
    x2 = jax.random.normal(k2, (B2, C2, H2, W2), dtype=jnp.float32)
    g2 = jnp.ones((1, C2, 1, 1), dtype=jnp.float32)
    b2 = jnp.zeros((1, C2, 1, 1), dtype=jnp.float32)
    out2 = jax.block_until_ready(prenorm(x2, g2, b2, fused_elementwise=act))
    ref2 = act(_reference_layer_norm(x2, g2, b2))
    assert jnp.allclose(out2, ref2, atol=3e-5, rtol=1e-5)

    print("KERNEL_OK")
</pallas_src>

<mosaic_0001>
module attributes {stable_mosaic.version = 11 : i64} {
  func.func @_prenorm_kernel(%arg0: i32, %arg1: i32, %arg2: memref<1x4x2x128xf32, #tpu.memory_space<vmem>>, %arg3: memref<4x1x1xf32, #tpu.memory_space<vmem>>, %arg4: memref<4x1x1xf32, #tpu.memory_space<vmem>>, %arg5: memref<1x4x2x128xf32, #tpu.memory_space<vmem>>) attributes {dimension_semantics = [#tpu.dimension_semantics<parallel>, #tpu.dimension_semantics<parallel>], iteration_bounds = array<i64: 2, 1>, scalar_prefetch = 0 : i64, scratch_operands = 0 : i64, tpu.core_type = #tpu.core_type<tc>, window_params = [{transform_indices = @transform_0, window_bounds = array<i64: 1, 4, 2, 128>}, {pipeline_mode = #tpu.pipeline_mode<synchronous>, transform_indices = @transform_1, window_bounds = array<i64: 4, 1, 1>}, {pipeline_mode = #tpu.pipeline_mode<synchronous>, transform_indices = @transform_2, window_bounds = array<i64: 4, 1, 1>}, {transform_indices = @transform_3, window_bounds = array<i64: 1, 4, 2, 128>}]} {
    %c0 = arith.constant 0 : index
    %c0_0 = arith.constant 0 : index
    %c0_1 = arith.constant 0 : index
    %c0_2 = arith.constant 0 : index
    %0 = vector.load %arg2[%c0, %c0_0, %c0_1, %c0_2] : memref<1x4x2x128xf32, #tpu.memory_space<vmem>>, vector<1x4x2x128xf32>
    %1 = vector.shape_cast %0 : vector<1x4x2x128xf32> to vector<4x2x128xf32>
    %cst = arith.constant dense<0.000000e+00> : vector<2x128xf32>
    %2 = vector.multi_reduction <add>, %1, %cst [0] : vector<4x2x128xf32> to vector<2x128xf32>
    %3 = vector.shape_cast %2 : vector<2x128xf32> to vector<1x2x128xf32>
    %cst_3 = arith.constant 2.500000e-01 : f32
    %4 = vector.broadcast %cst_3 : f32 to vector<1x2x128xf32>
    %5 = arith.mulf %3, %4 : vector<1x2x128xf32>
    %6 = vector.broadcast %5 : vector<1x2x128xf32> to vector<4x2x128xf32>
    %7 = arith.subf %1, %6 : vector<4x2x128xf32>
    %8 = arith.mulf %7, %7 : vector<4x2x128xf32>
    %cst_4 = arith.constant dense<0.000000e+00> : vector<2x128xf32>
    %9 = vector.multi_reduction <add>, %8, %cst_4 [0] : vector<4x2x128xf32> to vector<2x128xf32>
    %10 = vector.shape_cast %9 : vector<2x128xf32> to vector<1x2x128xf32>
    %cst_5 = arith.constant 2.500000e-01 : f32
    %11 = vector.broadcast %cst_5 : f32 to vector<1x2x128xf32>
    %12 = arith.mulf %10, %11 : vector<1x2x128xf32>
    %cst_6 = arith.constant 9.99999974E-6 : f32
    %13 = vector.broadcast %cst_6 : f32 to vector<1x2x128xf32>
    %14 = arith.addf %12, %13 : vector<1x2x128xf32>
    %15 = math.rsqrt %14 : vector<1x2x128xf32>
    %c0_7 = arith.constant 0 : index
    %c0_8 = arith.constant 0 : index
    %c0_9 = arith.constant 0 : index
    %16 = vector.load %arg3[%c0_7, %c0_8, %c0_9] : memref<4x1x1xf32, #tpu.memory_space<vmem>>, vector<4x1x1xf32>
    %c0_10 = arith.constant 0 : index
    %c0_11 = arith.constant 0 : index
    %c0_12 = arith.constant 0 : index
    %17 = vector.load %arg4[%c0_10, %c0_11, %c0_12] : memref<4x1x1xf32, #tpu.memory_space<vmem>>, vector<4x1x1xf32>
    %18 = vector.broadcast %15 : vector<1x2x128xf32> to vector<4x2x128xf32>
    %19 = arith.mulf %7, %18 : vector<4x2x128xf32>
    %20 = vector.broadcast %16 : vector<4x1x1xf32> to vector<4x2x128xf32>
    %21 = arith.mulf %19, %20 : vector<4x2x128xf32>
    %22 = vector.broadcast %17 : vector<4x1x1xf32> to vector<4x2x128xf32>
    %23 = arith.addf %21, %22 : vector<4x2x128xf32>
    %24 = arith.mulf %23, %23 : vector<4x2x128xf32>
    %25 = arith.mulf %23, %24 : vector<4x2x128xf32>
    %cst_13 = arith.constant 4.471500e-02 : f32
    %26 = vector.broadcast %cst_13 : f32 to vector<4x2x128xf32>
    %27 = arith.mulf %26, %25 : vector<4x2x128xf32>
    %28 = arith.addf %23, %27 : vector<4x2x128xf32>
    %cst_14 = arith.constant 0.797884583 : f32
    %29 = vector.broadcast %cst_14 : f32 to vector<4x2x128xf32>
    %30 = arith.mulf %29, %28 : vector<4x2x128xf32>
    %31 = math.tanh %30 : vector<4x2x128xf32>
    %cst_15 = arith.constant 1.000000e+00 : f32
    %32 = vector.broadcast %cst_15 : f32 to vector<4x2x128xf32>
    %33 = arith.addf %32, %31 : vector<4x2x128xf32>
    %cst_16 = arith.constant 5.000000e-01 : f32
    %34 = vector.broadcast %cst_16 : f32 to vector<4x2x128xf32>
    %35 = arith.mulf %34, %33 : vector<4x2x128xf32>
    %36 = arith.mulf %23, %35 : vector<4x2x128xf32>
    %c0_17 = arith.constant 0 : index
    %c0_18 = arith.constant 0 : index
    %c0_19 = arith.constant 0 : index
    %c0_20 = arith.constant 0 : index
    %37 = vector.load %arg5[%c0_17, %c0_18, %c0_19, %c0_20] : memref<1x4x2x128xf32, #tpu.memory_space<vmem>>, vector<1x4x2x128xf32>
    %38 = vector.shape_cast %37 : vector<1x4x2x128xf32> to vector<4x2x128xf32>
    %39 = vector.shape_cast %36 : vector<4x2x128xf32> to vector<1x4x2x128xf32>
    tpu.vector_store %arg5[%c0_17, %c0_18, %c0_19, %c0_20], %39 {strides = array<i32>} : memref<1x4x2x128xf32, #tpu.memory_space<vmem>>, vector<1x4x2x128xf32>,
    return
  }
  func.func @transform_0(%arg0: i32, %arg1: i32) -> (i32, i32, i32, i32) {
    %c0_i32 = arith.constant 0 : i32
    %c0_i32_0 = arith.constant 0 : i32
    %c0_i32_1 = arith.constant 0 : i32
    return %arg0, %c0_i32, %arg1, %c0_i32_0 : i32, i32, i32, i32
  }
  func.func @transform_1(%arg0: i32, %arg1: i32) -> (i32, i32, i32) {
    %c0_i32 = arith.constant 0 : i32
    %c0_i32_0 = arith.constant 0 : i32
    %c0_i32_1 = arith.constant 0 : i32
    %c0_i32_2 = arith.constant 0 : i32
    return %c0_i32, %c0_i32_0, %c0_i32_1 : i32, i32, i32
  }
  func.func @transform_2(%arg0: i32, %arg1: i32) -> (i32, i32, i32) {
    %c0_i32 = arith.constant 0 : i32
    %c0_i32_0 = arith.constant 0 : i32
    %c0_i32_1 = arith.constant 0 : i32
    %c0_i32_2 = arith.constant 0 : i32
    return %c0_i32, %c0_i32_0, %c0_i32_1 : i32, i32, i32
  }
  func.func @transform_3(%arg0: i32, %arg1: i32) -> (i32, i32, i32, i32) {
    %c0_i32 = arith.constant 0 : i32
    %c0_i32_0 = arith.constant 0 : i32
    %c0_i32_1 = arith.constant 0 : i32
    return %arg0, %c0_i32, %arg1, %c0_i32_0 : i32, i32, i32, i32
  }
}

</mosaic_0001>

<llo_original>
// kernel: tpu_custom_call.1
$region0: #{tpu_custom_call.1}
  #allocation0 [shape = 'u32[]', space=smem, size = 0x4, offset = 0x4, fixed_abs, tag = 'smem constant byte address 0x4 - core index']
  #allocation1 [shape = 'u32[144,128]{1,0:T(1,128)}', space=vmem, size = 0x12000, scoped, tag = 'internal scratch']
  %s0 = inlined_call_operand.hbm [shape: f32[2,4,2,128], index: 0, kind: input, shape index: {}]
  %s1 = inlined_call_operand.vmem [shape: f32[4,1,1], index: 1, kind: input, shape index: {}]
  %s2 = inlined_call_operand.vmem [shape: f32[4,1,1], index: 2, kind: input, shape index: {}]
  %s3 = inlined_call_operand.hbm [shape: f32[2,4,2,128], index: 3, kind: output, shape index: {}]
  %s4 = sld [smem:[#allocation0]]
  $region49: #{tpu_custom_call.1} parent=0
    _
  %s6 = ssub.s32 1, %s4
  %s7 = scalar_select 0, %s6, %s4
  $region1: #{tpu_custom_call.1} parent=0
    #allocation2 [shape = 'u8[8192]{0}', space=vmem, size = 0x2000, scoped, tag = 'input window, operand 0']
    #allocation3 [shape = 's32[2]{0}', space=sflag, size = 0x8, scoped, tag = 'scoped memory for tpu_custom_call.1']
    #allocation4 [shape = 's32[2]{0}', space=sflag, size = 0x8, scoped, tag = 'scoped memory for tpu_custom_call.1']
    #allocation5 [shape = 'u8[8192]{0}', space=vmem, size = 0x2000, scoped, tag = 'output window, operand 0']
    %8 = vsyncpa [#allocation3], 0
    %s9 = scalar_lea.sflag [#allocation3], 1
    %10 = vsyncpa %s9, 0
    %11 = vsyncpa [#allocation4], 0
    %s12 = scalar_lea.sflag [#allocation4], 1
    %13 = vsyncpa %s12, 0
    loop: start=0, step=1, limit=4
    $region2: #{tpu_custom_call.1} parent=1 // loop_pre_header
      _
    $region3: #{tpu_custom_call.1} parent=1 // loop_header
      %s15 = sphi 0, %s19
      %p16 = scmp.ge.s32.totalorder %s15, 4
      %s22 = sphi 0, %s34
      %s23 = sphi 0, %s30
      %s24 = sphi 0, %s22
      %s25 = sphi 0, %s23
      %s26 = sphi 0, %s24
      %s27 = sphi 0, %s25
      %s39 = sphi 0, %s41
      %s42 = sphi 0, %s39
      %s43 = sphi 0, %s42
      %s59 = sphi 0, %s43
      %s63 = sphi 0, %s63
      %s65 = sphi 0, %s63
      %s66 = sphi 0, %s65
      %s80 = sphi 0, %s66
      %s84 = sphi 0, %s84
      %s86 = sphi 0, %s84
      %s87 = sphi 0, %s86
      %s101 = sphi 0, %s87
      %s109 = sphi 0, %s111
      %s112 = sphi 0, %s109
      %s113 = sphi 0, %s112
      %s129 = sphi 0, %s113
    $region4: #{tpu_custom_call.1} parent=1 // loop_header_branch
      %18 = sbr.rel (%p16) target = $region8
    $region5: #{tpu_custom_call.1} parent=1 // loop_body
      %s20 = ssub.s32 %s15, 1
      %s21 = ssub.s32 %s15, 2
      %s28 = sadd.s32 1, %s23
      %p29 = scmp.ge.s32.totalorder %s28, 1
      %s30 = scalar_select %p29, 0, %s28
      %s31 = sadd.s32 1, %s22
      %s32 = scalar_select %p29, %s31, %s22
      %p33 = scmp.ge.s32.totalorder %s32, 2
      %s34 = scalar_select %p33, 0, %s32
      %s35 = ssub.s32 %s22, %s34
      %s36 = ssub.s32 %s23, %s30
      %s37 = sor.u32 %s35, %s36
      %p38 = scmp.eq.s32.totalorder %s37, 0
      %s40 = sadd.s32 %s39, 1
      %s41 = scalar_select %p38, %s39, %s40
      %p44 = pneg %p38
      %p45 = scmp.eq.s32.totalorder %s15, 1
      %p46 = por %p44, %p45
      %p47 = scmp.ne.s32.totalorder %s39, %s42
      %p48 = scmp.eq.s32.totalorder %s15, 0
      %p49 = por %p47, %p48
      %p50 = scmp.ne.s32.totalorder %s39, %s42
      %p51 = scmp.eq.s32.totalorder %s20, 1
      %p52 = por %p50, %p51
      %p53 = scmp.ne.s32.totalorder %s42, %s43
      %p54 = scmp.eq.s32.totalorder %s20, 0
      %p55 = por %p53, %p54
      %p56 = scmp.ne.s32.totalorder %s42, %s43
      %p57 = scmp.eq.s32.totalorder %s21, 1
      %p58 = por %p56, %p57
      %p60 = scmp.ne.s32.totalorder %s43, %s59
      %p61 = scmp.eq.s32.totalorder %s21, 0
      %p62 = por %p60, %p61
      %s64 = sadd.s32 %s63, 1
      %p67 = scmp.eq.s32.totalorder %s15, 1
      %p68 = scmp.ne.s32.totalorder %s63, %s65
      %p69 = scmp.eq.s32.totalorder %s15, 0
      %p70 = por %p68, %p69
      %p71 = scmp.ne.s32.totalorder %s63, %s65
      %p72 = scmp.eq.s32.totalorder %s20, 1
      %p73 = por %p71, %p72
      %p74 = scmp.ne.s32.totalorder %s65, %s66
      %p75 = scmp.eq.s32.totalorder %s20, 0
      %p76 = por %p74, %p75
      %p77 = scmp.ne.s32.totalorder %s65, %s66
      %p78 = scmp.eq.s32.totalorder %s21, 1
      %p79 = por %p77, %p78
      %p81 = scmp.ne.s32.totalorder %s66, %s80
      %p82 = scmp.eq.s32.totalorder %s21, 0
      %p83 = por %p81, %p82
      %s85 = sadd.s32 %s84, 1
      %p88 = scmp.eq.s32.totalorder %s15, 1
      %p89 = scmp.ne.s32.totalorder %s84, %s86
      %p90 = scmp.eq.s32.totalorder %s15, 0
      %p91 = por %p89, %p90
      %p92 = scmp.ne.s32.totalorder %s84, %s86
      %p93 = scmp.eq.s32.totalorder %s20, 1
      %p94 = por %p92, %p93
      %p95 = scmp.ne.s32.totalorder %s86, %s87
      %p96 = scmp.eq.s32.totalorder %s20, 0
      %p97 = por %p95, %p96
      %p98 = scmp.ne.s32.totalorder %s86, %s87
      %p99 = scmp.eq.s32.totalorder %s21, 1
      %p100 = por %p98, %p99
      %p102 = scmp.ne.s32.totalorder %s87, %s101
      %p103 = scmp.eq.s32.totalorder %s21, 0
      %p104 = por %p102, %p103
      %s105 = ssub.s32 %s22, %s34
      %s106 = ssub.s32 %s23, %s30
      %s107 = sor.u32 %s105, %s106
      %p108 = scmp.eq.s32.totalorder %s107, 0
      %s110 = sadd.s32 %s109, 1
      %s111 = scalar_select %p108, %s109, %s110
      %p114 = pneg %p108
      %p115 = scmp.eq.s32.totalorder %s15, 1
      %p116 = por %p114, %p115
      %p117 = scmp.ne.s32.totalorder %s109, %s112
      %p118 = scmp.eq.s32.totalorder %s15, 0
      %p119 = por %p117, %p118
      %p120 = scmp.ne.s32.totalorder %s109, %s112
      %p121 = scmp.eq.s32.totalorder %s20, 1
      %p122 = por %p120, %p121
      %p123 = scmp.ne.s32.totalorder %s112, %s113
      %p124 = scmp.eq.s32.totalorder %s20, 0
      %p125 = por %p123, %p124
      %p126 = scmp.ne.s32.totalorder %s112, %s113
      %p127 = scmp.eq.s32.totalorder %s21, 1
      %p128 = por %p126, %p127
      %p130 = scmp.ne.s32.totalorder %s113, %s129
      %p131 = scmp.eq.s32.totalorder %s21, 0
      %p132 = por %p130, %p131
      %p133 = scmp.le.s32.totalorder 1, %s15
      %p134 = scmp.lt.s32.totalorder %s15, 3
      %p135 = pnand %p133, %p134
      %p136 = pneg %p135
      // Predicated region
      $region9: #{tpu_custom_call.1} parent=5 // pred_check
        _
      $region10: #{tpu_custom_call.1} parent=5 // pred_check_branch
        %138 = sbr.rel (%p135) target = $region12
      $region11: #{tpu_custom_call.1} parent=5 // pred_region
        %s139 = ssub.s32 %s15, 1
        // Predicated region
        $region13: #{tpu_custom_call.1} parent=11 // pred_check
          %p140 = pneg %p76
        $region14: #{tpu_custom_call.1} parent=11 // pred_check_branch
          %142 = sbr.rel (%p140) target = $region16
        $region15: #{tpu_custom_call.1} parent=11 // pred_region
          _
        $region16: #{tpu_custom_call.1} parent=11 // pred_fallthru
          _
        // Predicated region
        $region17: #{tpu_custom_call.1} parent=11 // pred_check
          %p143 = pneg %p97
        $region18: #{tpu_custom_call.1} parent=11 // pred_check_branch
          %145 = sbr.rel (%p143) target = $region20
        $region19: #{tpu_custom_call.1} parent=11 // pred_region
          _
        $region20: #{tpu_custom_call.1} parent=11 // pred_fallthru
          _
      $region12: #{tpu_custom_call.1} parent=5 // pred_fallthru
        _
      %p146 = scmp.lt.s32.totalorder %s15, 2
      // Predicated region
      $region21: #{tpu_custom_call.1} parent=5 // pred_check
        %p147 = pneg %p146
      $region22: #{tpu_custom_call.1} parent=5 // pred_check_branch
        %149 = sbr.rel (%p147) target = $region24
      $region23: #{tpu_custom_call.1} parent=5 // pred_region
        // Predicated region
        $region25: #{tpu_custom_call.1} parent=23 // pred_check
          %p150 = pneg %p49
        $region26: #{tpu_custom_call.1} parent=23 // pred_check_branch
          %152 = sbr.rel (%p150) target = $region28
        $region27: #{tpu_custom_call.1} parent=23 // pred_region
          %s153 = sand.u32 %s39, 1
          %s154 = scalar_lea.sflag [#allocation3], %s153
          %s155 = sand.u32 %s39, 1
          %s156 = smul.addr %s155, 8
          %s157 = scalar_lea.vmem [#allocation2], %s156
          %s159 = ssub.s32 128, 128
          %160 = vsyncadd %s154, %s159
          %s161 = smul.addr %s22, 4
          %s162 = sadd.s32 %s23, %s161
          %s163 = smul.addr %s162, 32
          %s164 = scalar_lea.hbm %s0, %s163
          %s165 = sshll.u32 %s157, 4
          %s166 = int_to_ptr.vmem [resolvable:$true] %s165
          %171 = dma.hbm_to_vmem [thread:$0]  %s164, 128, %s166, %s154, 32, 32, 2
        $region28: #{tpu_custom_call.1} parent=23 // pred_fallthru
          _
      $region24: #{tpu_custom_call.1} parent=5 // pred_fallthru
        _
      %p172 = scmp.le.s32.totalorder 1, %s15
      %p173 = scmp.lt.s32.totalorder %s15, 3
      %p174 = pnand %p172, %p173
      %p175 = pneg %p174
      // Predicated region
      $region29: #{tpu_custom_call.1} parent=5 // pred_check
        _
      $region30: #{tpu_custom_call.1} parent=5 // pred_check_branch
        %177 = sbr.rel (%p174) target = $region32
      $region31: #{tpu_custom_call.1} parent=5 // pred_region
        %s178 = ssub.s32 %s15, 1
        %s179 = sand.u32 %s42, 1
        %s180 = scalar_lea.sflag [#allocation3], %s179
        %s181 = sand.u32 %s42, 1
        %s182 = smul.addr %s181, 8
        %s183 = scalar_lea.vmem [#allocation2], %s182
        // Predicated region
        $region33: #{tpu_custom_call.1} parent=31 // pred_check
          %p184 = pneg %p55
        $region34: #{tpu_custom_call.1} parent=31 // pred_check_branch
          %186 = sbr.rel (%p184) target = $region36
        $region35: #{tpu_custom_call.1} parent=31 // pred_region
          %187 = dma.done %s180, 128
        $region36: #{tpu_custom_call.1} parent=31 // pred_fallthru
          _
        %s188 = sand.u32 %s42, 1
        %s189 = scalar_lea.sflag [#allocation3], %s188
        %s190 = sand.u32 %s42, 1
        %s191 = smul.addr %s190, 8
        %s192 = scalar_lea.vmem [#allocation2], %s191
        %p193 = pneg %p55
        %p194 = pneg %p52
        %p195 = pneg %p76
        %p196 = pneg %p73
        %p197 = pneg %p97
        %p198 = pneg %p94
        %p199 = pneg %p125
        %p200 = pneg %p122
        %s201 = sand.u32 %s112, 1
        %s202 = scalar_lea.sflag [#allocation4], %s201
        %s203 = sand.u32 %s112, 1
        %s204 = smul.addr %s203, 8
        %s205 = scalar_lea.vmem [#allocation5], %s204
        %v206 = vld [vmem:[%s183] sm:$0x3]
        %v207 = vld [vmem:[%s183 + $0x2] sm:$0x3]
        %v208 = vld [vmem:[%s183 + $0x4] sm:$0x3]
        %v209 = vld [vmem:[%s183 + $0x6] sm:$0x3]
        %vm210 = vcmask 1041408
        %v211 = vsel %vm210, %v206, 0.0
        %v212 = vsel %vm210, %v207, 0.0
        %v213 = vadd.f32 %v211, %v212
        %v214 = vsel %vm210, %v208, 0.0
        %v215 = vadd.f32 %v213, %v214
        %v216 = vsel %vm210, %v209, 0.0
        %v217 = vadd.f32 %v215, %v216
        %v218 = vmul.f32 %v217, 0.25
        %v219 = vsub.f32 %v206, %v218
        %v220 = vsub.f32 %v207, %v218
        %v221 = vsub.f32 %v208, %v218
        %v222 = vsub.f32 %v209, %v218
        %v223 = vmul.f32 %v219, %v219
        %v224 = vmul.f32 %v220, %v220
        %v225 = vmul.f32 %v221, %v221
        %v226 = vmul.f32 %v222, %v222
        %v227 = vsel %vm210, %v223, 0.0
        %v228 = vsel %vm210, %v224, 0.0
        %v229 = vadd.f32 %v227, %v228
        %v230 = vsel %vm210, %v225, 0.0
        %v231 = vadd.f32 %v229, %v230
        %v232 = vsel %vm210, %v226, 0.0
        %v233 = vadd.f32 %v231, %v232
        %v234 = vmul.f32 %v233, 0.25
        %v235 = vadd.f32 %v234, 1e-05
        %v236 = vrsqrt.pop %v235
        %v237 = vld [vmem:[%s1] sm:$0x1]
        %v238 = vld [vmem:[%s1 + $0x1] sm:$0x1]
        %v239 = vld [vmem:[%s1 + $0x2] sm:$0x1]
        %v240 = vld [vmem:[%s1 + $0x3] sm:$0x1]
        %v241 = vld [vmem:[%s2] sm:$0x1]
        %v242 = vld [vmem:[%s2 + $0x1] sm:$0x1]
        %v243 = vld [vmem:[%s2 + $0x2] sm:$0x1]
        %v244 = vld [vmem:[%s2 + $0x3] sm:$0x1]
        %v245 = vmul.f32 %v219, %v236
        %v246 = vmul.f32 %v220, %v236
        %v247 = vmul.f32 %v221, %v236
        %v248 = vmul.f32 %v222, %v236
        %v253 = vlaneseq
        %v254 = vshrl.u32 %v253, 7
        %v255 = vsub.s32 0, %v254
        %v256 = vrot.slane %v237, %v255
        %v257 = vlaneseq
        %v258 = vshrl.u32 %v257, 7
        %v259 = vsub.s32 0, %v258
        %v260 = vrot.slane %v238, %v259
        %v261 = vlaneseq
        %v262 = vshrl.u32 %v261, 7
        %v263 = vsub.s32 0, %v262
        %v264 = vrot.slane %v239, %v263
        %v265 = vlaneseq
        %v266 = vshrl.u32 %v265, 7
        %v267 = vsub.s32 0, %v266
        %v268 = vrot.slane %v240, %v267
        %269 = vset.pattern.permute.xlu0 0
        %270 = vperm.xlu0 %269, %v256
        %v271 = vpop.permute.xlu0 %270
        %273 = vset.pattern.permute.xlu0 0
        %274 = vperm.xlu0 %273, %v260
        %v275 = vpop.permute.xlu0 %274
        %277 = vset.pattern.permute.xlu0 0
        %278 = vperm.xlu0 %277, %v264
        %v279 = vpop.permute.xlu0 %278
        %281 = vset.pattern.permute.xlu0 0
        %282 = vperm.xlu0 %281, %v268
        %v283 = vpop.permute.xlu0 %282
        %v285 = vmul.f32 %v245, %v271
        %v286 = vmul.f32 %v246, %v275
        %v287 = vmul.f32 %v247, %v279
        %v288 = vmul.f32 %v248, %v283
        %v293 = vlaneseq
        %v294 = vshrl.u32 %v293, 7
        %v295 = vsub.s32 0, %v294
        %v296 = vrot.slane %v241, %v295
        %v297 = vlaneseq
        %v298 = vshrl.u32 %v297, 7
        %v299 = vsub.s32 0, %v298
        %v300 = vrot.slane %v242, %v299
        %v301 = vlaneseq
        %v302 = vshrl.u32 %v301, 7
        %v303 = vsub.s32 0, %v302
        %v304 = vrot.slane %v243, %v303
        %v305 = vlaneseq
        %v306 = vshrl.u32 %v305, 7
        %v307 = vsub.s32 0, %v306
        %v308 = vrot.slane %v244, %v307
        %309 = vset.pattern.permute.xlu0 0
        %310 = vperm.xlu0 %309, %v296
        %v311 = vpop.permute.xlu0 %310
        %313 = vset.pattern.permute.xlu0 0
        %314 = vperm.xlu0 %313, %v300
        %v315 = vpop.permute.xlu0 %314
        %317 = vset.pattern.permute.xlu0 0
        %318 = vperm.xlu0 %317, %v304
        %v319 = vpop.permute.xlu0 %318
        %321 = vset.pattern.permute.xlu0 0
        %322 = vperm.xlu0 %321, %v308
        %v323 = vpop.permute.xlu0 %322
        %v325 = vadd.f32 %v285, %v311
        %v326 = vadd.f32 %v286, %v315
        %v327 = vadd.f32 %v287, %v319
        %v328 = vadd.f32 %v288, %v323
        %v329 = vmul.f32 %v325, %v325
        %v330 = vmul.f32 %v326, %v326
        %v331 = vmul.f32 %v327, %v327
        %v332 = vmul.f32 %v328, %v328
        %v333 = vmul.f32 %v325, %v329
        %v334 = vmul.f32 %v326, %v330
        %v335 = vmul.f32 %v327, %v331
        %v336 = vmul.f32 %v328, %v332
        %v337 = vmul.f32 %v333, 0.044715
        %v338 = vmul.f32 %v334, 0.044715
        %v339 = vmul.f32 %v335, 0.044715
        %v340 = vmul.f32 %v336, 0.044715
        %v341 = vadd.f32 %v325, %v337
        %v342 = vadd.f32 %v326, %v338
        %v343 = vadd.f32 %v327, %v339
        %v344 = vadd.f32 %v328, %v340
        %v345 = vmul.f32 %v341, 0.7978846
        %v346 = vmul.f32 %v342, 0.7978846
        %v347 = vmul.f32 %v343, 0.7978846
        %v348 = vmul.f32 %v344, 0.7978846
        %v349 = vtanh.pop %v345
        %v350 = vtanh.pop %v346
        %v351 = vtanh.pop %v347
        %v352 = vtanh.pop %v348
        %v353 = vadd.f32 %v349, 1.0
        %v354 = vadd.f32 %v350, 1.0
        %v355 = vadd.f32 %v351, 1.0
        %v356 = vadd.f32 %v352, 1.0
        %v357 = vmul.f32 %v353, 0.5
        %v358 = vmul.f32 %v354, 0.5
        %v359 = vmul.f32 %v355, 0.5
        %v360 = vmul.f32 %v356, 0.5
        %v361 = vmul.f32 %v325, %v357
        %v362 = vmul.f32 %v326, %v358
        %v363 = vmul.f32 %v327, %v359
        %v364 = vmul.f32 %v328, %v360
        %365 = vst [vmem:[%s205] sm:$0x3] %v361
        %366 = vst [vmem:[%s205 + $0x2] sm:$0x3] %v362
        %367 = vst [vmem:[%s205 + $0x4] sm:$0x3] %v363
        %368 = vst [vmem:[%s205 + $0x6] sm:$0x3] %v364
        %s369 = sand.u32 %s112, 1
        %s370 = scalar_lea.sflag [#allocation4], %s369
        %s371 = sand.u32 %s112, 1
        %s372 = smul.addr %s371, 8
        %s373 = scalar_lea.vmem [#allocation5], %s372
        // Predicated region
        $region37: #{tpu_custom_call.1} parent=31 // pred_check
          %p374 = pneg %p122
        $region38: #{tpu_custom_call.1} parent=31 // pred_check_branch
          %376 = sbr.rel (%p374) target = $region40
        $region39: #{tpu_custom_call.1} parent=31 // pred_region
          %s378 = ssub.s32 128, 128
          %379 = vsyncadd %s370, %s378
          %s380 = smul.addr %s24, 4
          %s381 = sadd.s32 %s25, %s380
          %s382 = smul.addr %s381, 32
          %s383 = scalar_lea.hbm %s3, %s382
          %s384 = sshll.u32 %s373, 4
          %s385 = int_to_ptr.vmem [resolvable:$true] %s384
          %390 = dma.vmem_to_hbm [thread:$0]  %s385, 128, %s383, %s370, 32, 32, 2
        $region40: #{tpu_custom_call.1} parent=31 // pred_fallthru
          _
      $region32: #{tpu_custom_call.1} parent=5 // pred_fallthru
        _
      %p391 = scmp.le.s32.totalorder 2, %s15
      // Predicated region
      $region41: #{tpu_custom_call.1} parent=5 // pred_check
        %p392 = pneg %p391
      $region42: #{tpu_custom_call.1} parent=5 // pred_check_branch
        %394 = sbr.rel (%p392) target = $region44
      $region43: #{tpu_custom_call.1} parent=5 // pred_region
        %s395 = ssub.s32 %s15, 2
        // Predicated region
        $region45: #{tpu_custom_call.1} parent=43 // pred_check
          %p396 = pneg %p128
        $region46: #{tpu_custom_call.1} parent=43 // pred_check_branch
          %398 = sbr.rel (%p396) target = $region48
        $region47: #{tpu_custom_call.1} parent=43 // pred_region
          %s399 = sand.u32 %s113, 1
          %s400 = scalar_lea.sflag [#allocation4], %s399
          %s401 = sand.u32 %s113, 1
          %s402 = smul.addr %s401, 8
          %s403 = scalar_lea.vmem [#allocation5], %s402
          %404 = dma.done %s400, 128
        $region48: #{tpu_custom_call.1} parent=43 // pred_fallthru
          _
      $region44: #{tpu_custom_call.1} parent=5 // pred_fallthru
        _
    $region6: #{tpu_custom_call.1} parent=1 // loop_footer
      %s19 = sadd.s32 1, %s15
    $region7: #{tpu_custom_call.1} parent=1 // loop_footer_branch
      %14 = sbr.rel target = $region3
    $region8: #{tpu_custom_call.1} parent=1 // loop_exit
      _
    %405 = vsyncpa [#allocation3], 1
    %s406 = scalar_lea.sflag [#allocation3], 1
    %407 = vsyncpa %s406, 1
    %408 = vsyncpa [#allocation4], 1
    %s409 = scalar_lea.sflag [#allocation4], 1
    %410 = vsyncpa %s409, 1

</llo_original>
